<compile_context>
chip_gen: v7x
topology: tpu7x:2x2x1
jax: 0.10.0
libtpu: 0.0.40
codegen_flags: <defaults>
</compile_context>

<pallas_src>
import functools

import jax
import jax.numpy as jnp
from jax import lax
from jax.experimental import pallas as pl
from jax.experimental.pallas import tpu as pltpu

EPS = 1e-5      # PyTorch BatchNorm1d default eps
LANES = 128     # lane-dense width


def _resblk_kernel(xin_ref, w1_ref, w2_ref, ws_ref, pp_ref, out_ref, *, L):
    """One row-tile of the ResBlk forward.

    xin_ref : (TM, K1pad)        packed [x1 | x2] rows (NLC flattened)
    w1_ref  : (3*K1pad, 128)     conv1 weights (BN1 folded), tap t in rows
                                 [t*K1pad : t*K1pad+Cin], lanes 0:Chid
    w2_ref  : (3*128, 128)       conv2 weights, tap t in rows [t*128 : t*128+Chid],
                                 lanes 0:Cout
    ws_ref  : (K1pad, 128)       k=1 skip conv; only the x2 rows are non-zero
    pp_ref  : (8, 128)           row0=b1(fused) row1=b2+bs row2=scale2 row3=shift2
                                 (scale2/shift2 positioned at lanes 64:64+Cout)
    out_ref : (TM, 128)          lanes 0:Cout = upper, lanes 64:64+Cout = lower
    """
    TM, Kx = xin_ref.shape
    Kh = w2_ref.shape[0] // 3            # padded hidden width (=128)

    # Per-row position inside its sequence; tiles always hold whole sequences,
    # so roll wrap-around rows are exactly the masked boundary rows.
    lpos = lax.broadcasted_iota(jnp.int32, (TM, 1), 0) % L
    m_prev = (lpos != 0).astype(jnp.float32)
    m_next = (lpos != (L - 1)).astype(jnp.float32)

    # ---- conv1 (BN1 pre-folded) + ReLU: three accumulated dots over taps ----
    x = xin_ref[...]
    x_prev = pltpu.roll(x, shift=1, axis=0) * m_prev
    x_next = pltpu.roll(x, shift=TM - 1, axis=0) * m_next
    h = (jnp.dot(x_prev, w1_ref[0:Kx, :], preferred_element_type=jnp.float32)
         + jnp.dot(x, w1_ref[Kx:2 * Kx, :], preferred_element_type=jnp.float32)
         + jnp.dot(x_next, w1_ref[2 * Kx:3 * Kx, :], preferred_element_type=jnp.float32)
         + pp_ref[0:1, :])
    h = jnp.maximum(h, 0.0)              # lanes >= Chid stay exactly 0
    # TODO(synk): Dropout(p=0.2) treated as identity (inference semantics).

    # ---- conv2 + k=1 skip conv: four accumulated dots, no lane concat ----
    h_prev = pltpu.roll(h, shift=1, axis=0) * m_prev
    h_next = pltpu.roll(h, shift=TM - 1, axis=0) * m_next
    upper = (jnp.dot(h_prev, w2_ref[0:Kh, :], preferred_element_type=jnp.float32)
             + jnp.dot(h, w2_ref[Kh:2 * Kh, :], preferred_element_type=jnp.float32)
             + jnp.dot(h_next, w2_ref[2 * Kh:3 * Kh, :], preferred_element_type=jnp.float32)
             + jnp.dot(x, ws_ref[...], preferred_element_type=jnp.float32)
             + pp_ref[1:2, :])           # valid in lanes 0:Cout, 0 elsewhere

    # ---- direct_path2: BN2 (pre-folded) -> ReLU, packed into lanes 64:128 ----
    # TODO(synk): Dropout(p=0.2) treated as identity (inference semantics).
    lower = jnp.maximum(
        pltpu.roll(upper, shift=64, axis=1) * pp_ref[2:3, :] + pp_ref[3:4, :], 0.0)

    out_ref[...] = upper + lower


def _pick_tile(M, L, cap=2048):
    """Largest row tile <= cap that is a multiple of 8 and of L and divides M."""
    n_seq = M // L
    for k in range(n_seq, 0, -1):
        tm = k * L
        if tm <= cap and tm % 8 == 0 and n_seq % k == 0:
            return tm
    return M   # fall back to a single whole-array block


def resblk_forward(x1, x2, params):
    """x1, x2: (N, Cin, L) float32, PyTorch NCL layout. Returns (lower, upper) NCL."""
    N, Cin, L = x1.shape
    Chid = params['w1'].shape[0]          # 64
    Cout = params['w2'].shape[0]
    assert Chid <= LANES
    assert Cout <= 64, "packed output layout assumes out_channels <= 64"
    # TODO(synk): out_channels > 64 would need a second output slab.

    M = N * L
    K1 = 2 * Cin
    K1pad = ((K1 + 7) // 8) * 8

    # ---- inputs: NCL -> NLC, pack [x1 | x2] into a single lane-padded slab ----
    x1_nlc = jnp.transpose(x1, (0, 2, 1)).astype(jnp.float32)
    x2_nlc = jnp.transpose(x2, (0, 2, 1)).astype(jnp.float32)
    xin = jnp.concatenate([x1_nlc, x2_nlc], axis=-1).reshape(M, K1)
    if K1pad > K1:
        xin = jnp.pad(xin, ((0, 0), (0, K1pad - K1)))

    # ---- fold BN1 (eval running stats) into conv1 weights/bias -------------
    scale1 = params['g1'] * lax.rsqrt(params['v1'] + EPS)
    shift1 = params['be1'] - params['m1'] * scale1
    b1f = params['b1'] * scale1 + shift1                         # (Chid,)

    w1 = jnp.transpose(params['w1'], (2, 1, 0)) * scale1[None, None, :]  # (3, Cin, Chid)
    w1pk = jnp.zeros((3 * K1pad, LANES), jnp.float32)
    for t in range(3):
        w1pk = w1pk.at[t * K1pad:t * K1pad + Cin, :Chid].set(w1[t])

    # ---- conv2 tap weights (hidden padded to 128 lanes) ----------------------
    w2 = jnp.transpose(params['w2'], (2, 1, 0))                  # (3, Chid, Cout)
    w2pk = jnp.zeros((3 * LANES, LANES), jnp.float32)
    for t in range(3):
        w2pk = w2pk.at[t * LANES:t * LANES + Chid, :Cout].set(w2[t])

    # ---- k=1 skip conv: only the x2 lanes of xin contribute ------------------
    ws = jnp.transpose(params['ws'][:, :, 0], (1, 0))            # (Cin, Cout)
    wspk = jnp.zeros((K1pad, LANES), jnp.float32).at[Cin:2 * Cin, :Cout].set(ws)

    b2f = params['b2'] + params['bs']
    scale2 = params['g2'] * lax.rsqrt(params['v2'] + EPS)
    shift2 = params['be2'] - params['m2'] * scale2

    # ---- pack per-channel vectors into one (8, 128) slab ---------------------
    pp = jnp.zeros((8, LANES), jnp.float32)
    pp = pp.at[0, :Chid].set(b1f)
    pp = pp.at[1, :Cout].set(b2f)
    pp = pp.at[2, 64:64 + Cout].set(scale2)
    pp = pp.at[3, 64:64 + Cout].set(shift2)

    TM = _pick_tile(M, L)
    grid = (M // TM,)
    tiled = lambda i: (i, 0)
    resident = lambda i: (0, 0)

    out = pl.pallas_call(
        functools.partial(_resblk_kernel, L=L),
        out_shape=jax.ShapeDtypeStruct((M, LANES), jnp.float32),
        grid=grid,
        in_specs=[
            pl.BlockSpec((TM, K1pad), tiled),          # packed activations
            pl.BlockSpec((3 * K1pad, LANES), resident),  # conv1 weights
            pl.BlockSpec((3 * LANES, LANES), resident),  # conv2 weights
            pl.BlockSpec((K1pad, LANES), resident),      # skip conv weights
            pl.BlockSpec((8, LANES), resident),          # packed per-channel params
        ],
        out_specs=pl.BlockSpec((TM, LANES), tiled),
        compiler_params=pltpu.CompilerParams(
            dimension_semantics=("parallel",)),
    )(xin, w1pk, w2pk, wspk, pp)

    y = out.reshape(N, L, LANES)
    upper = jnp.transpose(y[:, :, :Cout], (0, 2, 1))
    lower = jnp.transpose(y[:, :, 64:64 + Cout], (0, 2, 1))
    return lower, upper


def init_params(key, in_channels, out_channels, hidden=64):
    ks = jax.random.split(key, 14)
    nrm = lambda k, s, sc=0.1: sc * jax.random.normal(k, s, dtype=jnp.float32)
    return dict(
        # Conv1d(Cin -> 64, k=3), PyTorch weight layout (out, in, k)
        w1=nrm(ks[0], (hidden, in_channels, 3)),
        b1=nrm(ks[1], (hidden,)),
        # BatchNorm1d(64) (eval-mode running stats)
        g1=1.0 + nrm(ks[2], (hidden,)),
        be1=nrm(ks[3], (hidden,)),
        m1=nrm(ks[4], (hidden,)),
        v1=1.0 + jnp.abs(nrm(ks[5], (hidden,))),
        # Conv1d(64 -> Cout, k=3)
        w2=nrm(ks[6], (out_channels, hidden, 3)),
        b2=nrm(ks[7], (out_channels,)),
        # skip Conv1d(Cin -> Cout, k=1)
        ws=nrm(ks[8], (out_channels, in_channels, 1)),
        bs=nrm(ks[9], (out_channels,)),
        # BatchNorm1d(Cout)
        g2=1.0 + nrm(ks[10], (out_channels,)),
        be2=nrm(ks[11], (out_channels,)),
        m2=nrm(ks[12], (out_channels,)),
        v2=1.0 + jnp.abs(nrm(ks[13], (out_channels,))),
    )


def ref_forward(x1, x2, p):
    """Pure-JAX reference (NCL layout, eval mode), independent of the kernel math."""
    def conv_same(x, w, b):
        y = lax.conv_general_dilated(x, w, window_strides=(1,), padding='SAME',
                                     dimension_numbers=('NCH', 'OIH', 'NCH'))
        return y + b[None, :, None]

    def bn(x, g, be, m, v):
        sc = g * lax.rsqrt(v + EPS)
        return (x - m[None, :, None]) * sc[None, :, None] + be[None, :, None]

    h = jnp.maximum(bn(conv_same(x1, p['w1'], p['b1']),
                       p['g1'], p['be1'], p['m1'], p['v1']), 0.0)
    direct = conv_same(h, p['w2'], p['b2'])
    skip = conv_same(x2, p['ws'], p['bs'])
    upper = direct + skip
    lower = jnp.maximum(bn(upper, p['g2'], p['be2'], p['m2'], p['v2']), 0.0)
    return lower, upper


if __name__ == "__main__":
    key = jax.random.PRNGKey(0)
    k1, k2, kp = jax.random.split(key, 3)

    # small shapes consistent with the module:
    # ResBlk(in_channels=4, out_channels=8, n_samples_in=16, n_samples_out=16)
    N, Cin, Cout, L = 2, 4, 8, 16
    x1 = jax.random.normal(k1, (N, Cin, L), dtype=jnp.float32)
    x2 = jax.random.normal(k2, (N, Cin, L), dtype=jnp.float32)
    params = init_params(kp, Cin, Cout)

    lower, upper = resblk_forward(x1, x2, params)
    lower, upper = jax.block_until_ready((lower, upper))

    lo_ref, up_ref = ref_forward(x1, x2, params)
    assert lower.shape == (N, Cout, L) and upper.shape == (N, Cout, L)
    assert jnp.allclose(upper, up_ref, rtol=1e-4, atol=1e-4), "upper mismatch"
    assert jnp.allclose(lower, lo_ref, rtol=1e-4, atol=1e-4), "lower mismatch"
    print("KERNEL_OK")
</pallas_src>

<mosaic_0001>
module attributes {stable_mosaic.version = 11 : i64} {
  func.func @_resblk_kernel(%arg0: i32, %arg1: memref<32x8xf32, #tpu.memory_space<vmem>>, %arg2: memref<24x128xf32, #tpu.memory_space<vmem>>, %arg3: memref<384x128xf32, #tpu.memory_space<vmem>>, %arg4: memref<8x128xf32, #tpu.memory_space<vmem>>, %arg5: memref<8x128xf32, #tpu.memory_space<vmem>>, %arg6: memref<32x128xf32, #tpu.memory_space<vmem>>) attributes {dimension_semantics = [#tpu.dimension_semantics<parallel>], iteration_bounds = array<i64: 1>, scalar_prefetch = 0 : i64, scratch_operands = 0 : i64, tpu.core_type = #tpu.core_type<tc>, window_params = [{transform_indices = @transform_0, window_bounds = array<i64: 32, 8>}, {pipeline_mode = #tpu.pipeline_mode<synchronous>, transform_indices = @transform_1, window_bounds = array<i64: 24, 128>}, {pipeline_mode = #tpu.pipeline_mode<synchronous>, transform_indices = @transform_2, window_bounds = array<i64: 384, 128>}, {pipeline_mode = #tpu.pipeline_mode<synchronous>, transform_indices = @transform_3, window_bounds = array<i64: 8, 128>}, {pipeline_mode = #tpu.pipeline_mode<synchronous>, transform_indices = @transform_4, window_bounds = array<i64: 8, 128>}, {transform_indices = @transform_5, window_bounds = array<i64: 32, 128>}]} {
    %0 = tpu.iota {dimensions = array<i32: 0>} : vector<32x1xi32>
    %c16_i32 = arith.constant 16 : i32
    %c0_i32 = arith.constant 0 : i32
    %1 = arith.cmpi eq, %c16_i32, %c0_i32 : i32
    %c1_i32 = arith.constant 1 : i32
    %2 = arith.select %1, %c1_i32, %c16_i32 : i32
    %3 = vector.broadcast %2 : i32 to vector<32x1xi32>
    %4 = arith.remsi %0, %3 : vector<32x1xi32>
    %c0_i32_0 = arith.constant 0 : i32
    %5 = vector.broadcast %c0_i32_0 : i32 to vector<32x1xi32>
    %6 = arith.cmpi ne, %4, %5 : vector<32x1xi32>
    %c0_i32_1 = arith.constant 0 : i32
    %7 = vector.broadcast %c0_i32_1 : i32 to vector<32x1xi32>
    %8 = arith.cmpi slt, %4, %7 : vector<32x1xi32>
    %c0_i32_2 = arith.constant 0 : i32
    %9 = arith.cmpi slt, %2, %c0_i32_2 : i32
    %10 = vector.broadcast %9 : i1 to vector<32x1xi1>
    %11 = vector.broadcast %10 : vector<32x1xi1> to vector<32x1xi1>
    %12 = arith.xori %8, %11 : vector<32x1xi1>
    %13 = arith.andi %12, %6 : vector<32x1xi1>
    %14 = vector.broadcast %2 : i32 to vector<32x1xi32>
    %15 = arith.addi %4, %14 : vector<32x1xi32>
    %16 = arith.select %13, %15, %4 : vector<32x1xi1>, vector<32x1xi32>
    %c0_i32_3 = arith.constant 0 : i32
    %17 = vector.broadcast %c0_i32_3 : i32 to vector<32x1xi32>
    %18 = arith.cmpi ne, %16, %17 : vector<32x1xi32>
    %19 = arith.extui %18 : vector<32x1xi1> to vector<32x1xi32>
    %20 = arith.sitofp %19 : vector<32x1xi32> to vector<32x1xf32>
    %c15_i32 = arith.constant 15 : i32
    %21 = vector.broadcast %c15_i32 : i32 to vector<32x1xi32>
    %22 = arith.cmpi ne, %16, %21 : vector<32x1xi32>
    %23 = arith.extui %22 : vector<32x1xi1> to vector<32x1xi32>
    %24 = arith.sitofp %23 : vector<32x1xi32> to vector<32x1xf32>
    %c0 = arith.constant 0 : index
    %c0_4 = arith.constant 0 : index
    %25 = vector.load %arg1[%c0, %c0_4] : memref<32x8xf32, #tpu.memory_space<vmem>>, vector<32x8xf32>
    %c1_i32_5 = arith.constant 1 : i32
    %26 = tpu.dynamic_rotate %25 by %c1_i32_5 dim 0 : vector<32x8xf32>, i32 -> vector<32x8xf32>
    %27 = vector.broadcast %20 : vector<32x1xf32> to vector<32x8xf32>
    %28 = arith.mulf %26, %27 : vector<32x8xf32>
    %c31_i32 = arith.constant 31 : i32
    %29 = tpu.dynamic_rotate %25 by %c31_i32 dim 0 : vector<32x8xf32>, i32 -> vector<32x8xf32>
    %30 = vector.broadcast %24 : vector<32x1xf32> to vector<32x8xf32>
    %31 = arith.mulf %29, %30 : vector<32x8xf32>
    %c0_6 = arith.constant 0 : index
    %c0_7 = arith.constant 0 : index
    %32 = vector.load %arg2[%c0_6, %c0_7] : memref<24x128xf32, #tpu.memory_space<vmem>>, vector<8x128xf32>
    %cst = arith.constant dense<0.000000e+00> : vector<32x128xf32>
    %33 = tpu.matmul %28, %32, %cst {dimension_numbers = #tpu.dot_dimension_numbers<[1], [0], [0], [1], [0, 0, 1, 1], [], []>} : vector<32x8xf32>, vector<8x128xf32>, vector<32x128xf32> -> vector<32x128xf32>
    %c8 = arith.constant 8 : index
    %c0_8 = arith.constant 0 : index
    %34 = vector.load %arg2[%c8, %c0_8] : memref<24x128xf32, #tpu.memory_space<vmem>>, vector<8x128xf32>
    %cst_9 = arith.constant dense<0.000000e+00> : vector<32x128xf32>
    %35 = tpu.matmul %25, %34, %cst_9 {dimension_numbers = #tpu.dot_dimension_numbers<[1], [0], [0], [1], [0, 0, 1, 1], [], []>} : vector<32x8xf32>, vector<8x128xf32>, vector<32x128xf32> -> vector<32x128xf32>
    %36 = arith.addf %33, %35 : vector<32x128xf32>
    %c16 = arith.constant 16 : index
    %c0_10 = arith.constant 0 : index
    %37 = vector.load %arg2[%c16, %c0_10] : memref<24x128xf32, #tpu.memory_space<vmem>>, vector<8x128xf32>
    %cst_11 = arith.constant dense<0.000000e+00> : vector<32x128xf32>
    %38 = tpu.matmul %31, %37, %cst_11 {dimension_numbers = #tpu.dot_dimension_numbers<[1], [0], [0], [1], [0, 0, 1, 1], [], []>} : vector<32x8xf32>, vector<8x128xf32>, vector<32x128xf32> -> vector<32x128xf32>
    %39 = arith.addf %36, %38 : vector<32x128xf32>
    %c0_12 = arith.constant 0 : index
    %c0_13 = arith.constant 0 : index
    %40 = vector.load %arg5[%c0_12, %c0_13] : memref<8x128xf32, #tpu.memory_space<vmem>>, vector<1x128xf32>
    %41 = vector.broadcast %40 : vector<1x128xf32> to vector<32x128xf32>
    %42 = arith.addf %39, %41 : vector<32x128xf32>
    %cst_14 = arith.constant 0.000000e+00 : f32
    %43 = vector.broadcast %cst_14 : f32 to vector<32x128xf32>
    %44 = arith.maximumf %42, %43 : vector<32x128xf32>
    %c1_i32_15 = arith.constant 1 : i32
    %45 = tpu.dynamic_rotate %44 by %c1_i32_15 dim 0 : vector<32x128xf32>, i32 -> vector<32x128xf32>
    %46 = vector.broadcast %20 : vector<32x1xf32> to vector<32x128xf32>
    %47 = arith.mulf %45, %46 : vector<32x128xf32>
    %c31_i32_16 = arith.constant 31 : i32
    %48 = tpu.dynamic_rotate %44 by %c31_i32_16 dim 0 : vector<32x128xf32>, i32 -> vector<32x128xf32>
    %49 = vector.broadcast %24 : vector<32x1xf32> to vector<32x128xf32>
    %50 = arith.mulf %48, %49 : vector<32x128xf32>
    %c0_17 = arith.constant 0 : index
    %c0_18 = arith.constant 0 : index
    %51 = vector.load %arg3[%c0_17, %c0_18] : memref<384x128xf32, #tpu.memory_space<vmem>>, vector<128x128xf32>
    %cst_19 = arith.constant dense<0.000000e+00> : vector<32x128xf32>
    %52 = tpu.matmul %47, %51, %cst_19 {dimension_numbers = #tpu.dot_dimension_numbers<[1], [0], [0], [1], [0, 0, 1, 1], [], []>} : vector<32x128xf32>, vector<128x128xf32>, vector<32x128xf32> -> vector<32x128xf32>
    %c128 = arith.constant 128 : index
    %c0_20 = arith.constant 0 : index
    %53 = vector.load %arg3[%c128, %c0_20] : memref<384x128xf32, #tpu.memory_space<vmem>>, vector<128x128xf32>
    %cst_21 = arith.constant dense<0.000000e+00> : vector<32x128xf32>
    %54 = tpu.matmul %44, %53, %cst_21 {dimension_numbers = #tpu.dot_dimension_numbers<[1], [0], [0], [1], [0, 0, 1, 1], [], []>} : vector<32x128xf32>, vector<128x128xf32>, vector<32x128xf32> -> vector<32x128xf32>
    %55 = arith.addf %52, %54 : vector<32x128xf32>
    %c256 = arith.constant 256 : index
    %c0_22 = arith.constant 0 : index
    %56 = vector.load %arg3[%c256, %c0_22] : memref<384x128xf32, #tpu.memory_space<vmem>>, vector<128x128xf32>
    %cst_23 = arith.constant dense<0.000000e+00> : vector<32x128xf32>
    %57 = tpu.matmul %50, %56, %cst_23 {dimension_numbers = #tpu.dot_dimension_numbers<[1], [0], [0], [1], [0, 0, 1, 1], [], []>} : vector<32x128xf32>, vector<128x128xf32>, vector<32x128xf32> -> vector<32x128xf32>
    %58 = arith.addf %55, %57 : vector<32x128xf32>
    %c0_24 = arith.constant 0 : index
    %c0_25 = arith.constant 0 : index
    %59 = vector.load %arg4[%c0_24, %c0_25] : memref<8x128xf32, #tpu.memory_space<vmem>>, vector<8x128xf32>
    %cst_26 = arith.constant dense<0.000000e+00> : vector<32x128xf32>
    %60 = tpu.matmul %25, %59, %cst_26 {dimension_numbers = #tpu.dot_dimension_numbers<[1], [0], [0], [1], [0, 0, 1, 1], [], []>} : vector<32x8xf32>, vector<8x128xf32>, vector<32x128xf32> -> vector<32x128xf32>
    %61 = arith.addf %58, %60 : vector<32x128xf32>
    %c1 = arith.constant 1 : index
    %c0_27 = arith.constant 0 : index
    %62 = vector.load %arg5[%c1, %c0_27] : memref<8x128xf32, #tpu.memory_space<vmem>>, vector<1x128xf32>
    %63 = vector.broadcast %62 : vector<1x128xf32> to vector<32x128xf32>
    %64 = arith.addf %61, %63 : vector<32x128xf32>
    %c64_i32 = arith.constant 64 : i32
    %65 = tpu.dynamic_rotate %64 by %c64_i32 dim 1 : vector<32x128xf32>, i32 -> vector<32x128xf32>
    %c2 = arith.constant 2 : index
    %c0_28 = arith.constant 0 : index
    %66 = vector.load %arg5[%c2, %c0_28] : memref<8x128xf32, #tpu.memory_space<vmem>>, vector<1x128xf32>
    %67 = vector.broadcast %66 : vector<1x128xf32> to vector<32x128xf32>
    %68 = arith.mulf %65, %67 : vector<32x128xf32>
    %c3 = arith.constant 3 : index
    %c0_29 = arith.constant 0 : index
    %69 = vector.load %arg5[%c3, %c0_29] : memref<8x128xf32, #tpu.memory_space<vmem>>, vector<1x128xf32>
    %70 = vector.broadcast %69 : vector<1x128xf32> to vector<32x128xf32>
    %71 = arith.addf %68, %70 : vector<32x128xf32>
    %cst_30 = arith.constant 0.000000e+00 : f32
    %72 = vector.broadcast %cst_30 : f32 to vector<32x128xf32>
    %73 = arith.maximumf %71, %72 : vector<32x128xf32>
    %74 = arith.addf %64, %73 : vector<32x128xf32>
    %c0_31 = arith.constant 0 : index
    %c0_32 = arith.constant 0 : index
    %75 = vector.load %arg6[%c0_31, %c0_32] : memref<32x128xf32, #tpu.memory_space<vmem>>, vector<32x128xf32>
    tpu.vector_store %arg6[%c0_31, %c0_32], %74 {strides = array<i32>} : memref<32x128xf32, #tpu.memory_space<vmem>>, vector<32x128xf32>,
    return
  }
  func.func @transform_0(%arg0: i32) -> (i32, i32) {
    %c0_i32 = arith.constant 0 : i32
    %c0_i32_0 = arith.constant 0 : i32
    return %arg0, %c0_i32 : i32, i32
  }
  func.func @transform_1(%arg0: i32) -> (i32, i32) {
    %c0_i32 = arith.constant 0 : i32
    %c0_i32_0 = arith.constant 0 : i32
    %c0_i32_1 = arith.constant 0 : i32
    return %c0_i32, %c0_i32_0 : i32, i32
  }
  func.func @transform_2(%arg0: i32) -> (i32, i32) {
    %c0_i32 = arith.constant 0 : i32
    %c0_i32_0 = arith.constant 0 : i32
    %c0_i32_1 = arith.constant 0 : i32
    return %c0_i32, %c0_i32_0 : i32, i32
  }
  func.func @transform_3(%arg0: i32) -> (i32, i32) {
    %c0_i32 = arith.constant 0 : i32
    %c0_i32_0 = arith.constant 0 : i32
    %c0_i32_1 = arith.constant 0 : i32
    return %c0_i32, %c0_i32_0 : i32, i32
  }
  func.func @transform_4(%arg0: i32) -> (i32, i32) {
    %c0_i32 = arith.constant 0 : i32
    %c0_i32_0 = arith.constant 0 : i32
    %c0_i32_1 = arith.constant 0 : i32
    return %c0_i32, %c0_i32_0 : i32, i32
  }
  func.func @transform_5(%arg0: i32) -> (i32, i32) {
    %c0_i32 = arith.constant 0 : i32
    %c0_i32_0 = arith.constant 0 : i32
    return %arg0, %c0_i32 : i32, i32
  }
}

</mosaic_0001>

<llo_original>
// kernel: tpu_custom_call.1
$region0: #{tpu_custom_call.1}
  #allocation0 [shape = 'u32[]', space=smem, size = 0x4, offset = 0x4, fixed_abs, tag = 'smem constant byte address 0x4 - core index']
  #allocation1 [shape = 'u32[144,128]{1,0:T(1,128)}', space=vmem, size = 0x12000, scoped, tag = 'internal scratch']
  %s0 = inlined_call_operand.vmem [shape: f32[32,8], index: 0, kind: input, shape index: {}]
  %s1 = inlined_call_operand.vmem [shape: f32[24,128], index: 1, kind: input, shape index: {}]
  %s2 = inlined_call_operand.hbm [shape: f32[384,128], index: 2, kind: input, shape index: {}]
  %s3 = inlined_call_operand.vmem [shape: f32[8,128], index: 3, kind: input, shape index: {}]
  %s4 = inlined_call_operand.vmem [shape: f32[8,128], index: 4, kind: input, shape index: {}]
  %s5 = inlined_call_operand.hbm [shape: f32[32,128], index: 5, kind: output, shape index: {}]
  %s6 = sld [smem:[#allocation0]]
  $region34: #{tpu_custom_call.1} parent=0
    _
  %s8 = ssub.s32 1, %s6
  %s9 = scalar_select 0, %s8, %s6
  $region1: #{tpu_custom_call.1} parent=0
    #allocation2 [shape = 'u8[196608]{0}', space=vmem, size = 0x30000, scoped, tag = 'input window, operand 2, single buffered']
    #allocation3 [shape = 's32[1]{0}', space=sflag, size = 0x4, scoped, tag = 'scoped memory for tpu_custom_call.1']
    #allocation4 [shape = 's32[1]{0}', space=sflag, size = 0x4, scoped, tag = 'scoped memory for tpu_custom_call.1']
    #allocation5 [shape = 'u8[16384]{0}', space=vmem, size = 0x4000, scoped, tag = 'output window, operand 0, single buffered']
    %10 = vsyncpa [#allocation3], 0
    %11 = vsyncpa [#allocation4], 0
    // Predicated region
    $region2: #{tpu_custom_call.1} parent=1 // pred_check
      _
    $region3: #{tpu_custom_call.1} parent=1 // pred_check_branch
      %13 = sbr.rel (0) target = $region5
    $region4: #{tpu_custom_call.1} parent=1 // pred_region
      _
    $region5: #{tpu_custom_call.1} parent=1 // pred_fallthru
      _
    // Predicated region
    $region6: #{tpu_custom_call.1} parent=1 // pred_check
      _
    $region7: #{tpu_custom_call.1} parent=1 // pred_check_branch
      %15 = sbr.rel (0) target = $region9
    $region8: #{tpu_custom_call.1} parent=1 // pred_region
      _
    $region9: #{tpu_custom_call.1} parent=1 // pred_fallthru
      _
    // Predicated region
    $region10: #{tpu_custom_call.1} parent=1 // pred_check
      _
    $region11: #{tpu_custom_call.1} parent=1 // pred_check_branch
      %17 = sbr.rel (0) target = $region13
    $region12: #{tpu_custom_call.1} parent=1 // pred_region
      %s19 = ssub.s32 6144, 6144
      %20 = vsyncadd [#allocation3], %s19
      %s21 = sshll.u32 [#allocation2], 4
      %s22 = int_to_ptr.vmem [resolvable:$true] %s21
      %27 = dma.hbm_to_vmem [thread:$0]  %s2, 6144, %s22, [#allocation3], 128, 128, 8
    $region13: #{tpu_custom_call.1} parent=1 // pred_fallthru
      _
    // Predicated region
    $region14: #{tpu_custom_call.1} parent=1 // pred_check
      _
    $region15: #{tpu_custom_call.1} parent=1 // pred_check_branch
      %29 = sbr.rel (0) target = $region17
    $region16: #{tpu_custom_call.1} parent=1 // pred_region
      _
    $region17: #{tpu_custom_call.1} parent=1 // pred_fallthru
      _
    // Predicated region
    $region18: #{tpu_custom_call.1} parent=1 // pred_check
      _
    $region19: #{tpu_custom_call.1} parent=1 // pred_check_branch
      %31 = sbr.rel (0) target = $region21
    $region20: #{tpu_custom_call.1} parent=1 // pred_region
      _
    $region21: #{tpu_custom_call.1} parent=1 // pred_fallthru
      _
    // Predicated region
    $region22: #{tpu_custom_call.1} parent=1 // pred_check
      _
    $region23: #{tpu_custom_call.1} parent=1 // pred_check_branch
      %33 = sbr.rel (0) target = $region25
    $region24: #{tpu_custom_call.1} parent=1 // pred_region
      %34 = dma.done [#allocation3], 6144
    $region25: #{tpu_custom_call.1} parent=1 // pred_fallthru
      _
    %v35 = vlaneseq
    %v36 = vshrl.u32 %v35, 7
    %v37 = vadd.s32 %v36, 8
    %v38 = vadd.s32 %v36, 16
    %v39 = vadd.s32 %v36, 24
    %vm40 = vcmp.lt.s32.totalorder %v36, 0
    %v41 = vsub.s32 0, %v36
    %v42 = vsel %vm40, %v41, %v36
    %v43 = vshrl.u32 %v42, 4
    %v44 = vand.u32 %v42, 15
    %v45 = vsub.s32 0, %v44
    %v46 = vsel %vm40, %v45, %v44
    %vm47 = vcmp.lt.s32.totalorder %v37, 0
    %v48 = vsub.s32 0, %v37
    %v49 = vsel %vm47, %v48, %v37
    %v50 = vshrl.u32 %v49, 4
    %v51 = vand.u32 %v49, 15
    %v52 = vsub.s32 0, %v51
    %v53 = vsel %vm47, %v52, %v51
    %vm54 = vcmp.lt.s32.totalorder %v38, 0
    %v55 = vsub.s32 0, %v38
    %v56 = vsel %vm54, %v55, %v38
    %v57 = vshrl.u32 %v56, 4
    %v58 = vand.u32 %v56, 15
    %v59 = vsub.s32 0, %v58
    %v60 = vsel %vm54, %v59, %v58
    %vm61 = vcmp.lt.s32.totalorder %v39, 0
    %v62 = vsub.s32 0, %v39
    %v63 = vsel %vm61, %v62, %v39
    %v64 = vshrl.u32 %v63, 4
    %v65 = vand.u32 %v63, 15
    %v66 = vsub.s32 0, %v65
    %v67 = vsel %vm61, %v66, %v65
    %vm68 = vcmp.ne.s32.totalorder %v46, 0
    %vm69 = vcmp.ne.s32.totalorder %v53, 0
    %vm70 = vcmp.ne.s32.totalorder %v60, 0
    %vm71 = vcmp.ne.s32.totalorder %v67, 0
    %vm72 = vcmp.lt.s32.totalorder %v46, 0
    %vm73 = vcmp.lt.s32.totalorder %v53, 0
    %vm74 = vcmp.lt.s32.totalorder %v60, 0
    %vm75 = vcmp.lt.s32.totalorder %v67, 0
    %vm76 = vmand %vm72, %vm68
    %vm77 = vmand %vm73, %vm69
    %vm78 = vmand %vm74, %vm70
    %vm79 = vmand %vm75, %vm71
    %v80 = vadd.s32 %v46, 16
    %v81 = vadd.s32 %v53, 16
    %v82 = vadd.s32 %v60, 16
    %v83 = vadd.s32 %v67, 16
    %v84 = vsel %vm76, %v80, %v46
    %v85 = vsel %vm77, %v81, %v53
    %v86 = vsel %vm78, %v82, %v60
    %v87 = vsel %vm79, %v83, %v67
    %vm88 = vcmp.ne.s32.totalorder %v84, 0
    %vm89 = vcmp.ne.s32.totalorder %v85, 0
    %vm90 = vcmp.ne.s32.totalorder %v86, 0
    %vm91 = vcmp.ne.s32.totalorder %v87, 0
    %v92 = vsel %vm88, 1, 0
    %v93 = vsel %vm89, 1, 0
    %v94 = vsel %vm90, 1, 0
    %v95 = vsel %vm91, 1, 0
    %v96 = vcvt.s32.f32 %v92
    %v97 = vcvt.s32.f32 %v93
    %v98 = vcvt.s32.f32 %v94
    %v99 = vcvt.s32.f32 %v95
    %vm100 = vcmp.ne.s32.totalorder %v84, 15
    %vm101 = vcmp.ne.s32.totalorder %v85, 15
    %vm102 = vcmp.ne.s32.totalorder %v86, 15
    %vm103 = vcmp.ne.s32.totalorder %v87, 15
    %v104 = vsel %vm100, 1, 0
    %v105 = vsel %vm101, 1, 0
    %v106 = vsel %vm102, 1, 0
    %v107 = vsel %vm103, 1, 0
    %v108 = vcvt.s32.f32 %v104
    %v109 = vcvt.s32.f32 %v105
    %v110 = vcvt.s32.f32 %v106
    %v111 = vcvt.s32.f32 %v107
    %v112 = vld [vmem:[%s0] sm:$0xff]
    %v113 = vld [vmem:[%s0 + $0x8] sm:$0xff]
    %v114 = vld [vmem:[%s0 + $0x10] sm:$0xff]
    %v115 = vld [vmem:[%s0 + $0x18] sm:$0xff]
    %v116 = vrot.slane %v112, 7
    %v117 = vrot.slane %v113, 7
    %v118 = vrot.slane %v114, 7
    %v119 = vrot.slane %v115, 7
    %vm120 = vcmp.lt.s32.totalorder %v36, 1
    %v121 = vsel %vm120, %v118, %v119
    %v122 = vsel %vm120, %v117, %v118
    %v123 = vsel %vm120, %v116, %v117
    %v124 = vsel %vm120, %v119, %v116
    %v125 = vmul.f32 %v124, %v96
    %v126 = vmul.f32 %v123, %v97
    %v127 = vmul.f32 %v122, %v98
    %v128 = vmul.f32 %v121, %v99
    %v129 = vrot.slane %v112, 1
    %v130 = vrot.slane %v113, 1
    %v131 = vrot.slane %v114, 1
    %v132 = vrot.slane %v115, 1
    %vm133 = vcmp.lt.s32.totalorder %v36, 7
    %v134 = vsel %vm133, %v131, %v132
    %v135 = vsel %vm133, %v130, %v131
    %v136 = vsel %vm133, %v129, %v130
    %v137 = vsel %vm133, %v132, %v129
    %v138 = vmul.f32 %v136, %v108
    %v139 = vmul.f32 %v135, %v109
    %v140 = vmul.f32 %v134, %v110
    %v141 = vmul.f32 %v137, %v111
    %v142 = vld [vmem:[%s1] sm:$0xff]
    %v143 = vld [vmem:[%s1 + $0x8] sm:$0xff]
    %vm144 = vcmask 64512
    %v146 = vsel %vm144, %v112, 0
    %v149 = vsel %vm144, %v113, 0
    %v152 = vsel %vm144, %v114, 0
    %v155 = vsel %vm144, %v115, 0
    %157 = vmatprep.subr.mxu0 0.0
    %158 = vmatpush1.msra.mxu0 %v143
    %159 = vmatprep.subr.mxu0 0.0
    %160 = vmatpush1.msra.mxu0 0.0
    %161 = vmatprep.subr.mxu0 0.0
    %162 = vmatpush1.msra.mxu0 0.0
    %163 = vmatprep.subr.mxu0 0.0
    %164 = vmatpush1.msra.mxu0 0.0
    %165 = vmatprep.subr.mxu0 0.0
    %166 = vmatpush1.msra.mxu0 0.0
    %167 = vmatprep.subr.mxu0 0.0
    %168 = vmatpush1.msra.mxu0 0.0
    %169 = vmatprep.subr.mxu0 0.0
    %170 = vmatpush1.msra.mxu0 0.0
    %171 = vmatprep.subr.mxu0 0.0
    %172 = vmatpush1.msra.mxu0 0.0
    %173 = vmatprep.subr.mxu0 0.0
    %174 = vmatpush1.msra.mxu0 0.0
    %175 = vmatprep.subr.mxu0 0.0
    %176 = vmatpush1.msra.mxu0 0.0
    %177 = vmatprep.subr.mxu0 0.0
    %178 = vmatpush1.msra.mxu0 0.0
    %179 = vmatprep.subr.mxu0 0.0
    %180 = vmatpush1.msra.mxu0 0.0
    %181 = vmatprep.subr.mxu0 0.0
    %182 = vmatpush1.msra.mxu0 0.0
    %183 = vmatprep.subr.mxu0 0.0
    %184 = vmatpush1.msra.mxu0 0.0
    %185 = vmatprep.subr.mxu0 0.0
    %186 = vmatpush1.msra.mxu0 0.0
    %187 = vmatprep.subr.mxu0 0.0
    %188 = vmatpush1.msra.mxu0 0.0
    %189 = vmatprep.subr.mxu0 0.0
    %190 = vmatpush1.msra.mxu0 0.0
    %191 = vmatprep.subr.mxu0 0.0
    %192 = vmatpush1.msra.mxu0 0.0
    %193 = vmatprep.subr.mxu0 0.0
    %194 = vmatpush1.msra.mxu0 0.0
    %195 = vmatprep.subr.mxu0 0.0
    %196 = vmatpush1.msra.mxu0 0.0
    %197 = vmatprep.subr.mxu0 0.0
    %198 = vmatpush1.msra.mxu0 0.0
    %199 = vmatprep.subr.mxu0 0.0
    %200 = vmatpush1.msra.mxu0 0.0
    %201 = vmatprep.subr.mxu0 0.0
    %202 = vmatpush1.msra.mxu0 0.0
    %203 = vmatprep.subr.mxu0 0.0
    %204 = vmatpush1.msra.mxu0 0.0
    %205 = vmatprep.subr.mxu0 0.0
    %206 = vmatpush1.msra.mxu0 0.0
    %207 = vmatprep.subr.mxu0 0.0
    %208 = vmatpush1.msra.mxu0 0.0
    %209 = vmatprep.subr.mxu0 0.0
    %210 = vmatpush1.msra.mxu0 0.0
    %211 = vmatprep.subr.mxu0 0.0
    %212 = vmatpush1.msra.mxu0 0.0
    %213 = vmatprep.subr.mxu0 0.0
    %214 = vmatpush1.msra.mxu0 0.0
    %215 = vmatprep.subr.mxu0 0.0
    %216 = vmatpush1.msra.mxu0 0.0
    %217 = vmatprep.subr.mxu0 0.0
    %218 = vmatpush1.msra.mxu0 0.0
    %219 = vmatprep.subr.mxu0 0.0
    %220 = vmatpush1.msra.mxu0 0.0
    %221 = vmatprep.mubr.f32.mxu0 0.0
    %222 = vmatmul.mubr.f32.gmra.mrb[0].mxu0 %v146
    %v223 = vpop.f32.mrb[0].mxu0
    %v224 = vadd.f32 0.0, %v223
    %v225 = vpop.f32.mrb[0].mxu0
    %226 = vmatprep.mubr.f32.mxu0 0.0
    %227 = vmatmul.mubr.f32.gmra.mrb[0].mxu0 %v149
    %v228 = vpop.f32.mrb[0].mxu0
    %v229 = vadd.f32 0.0, %v228
    %v230 = vpop.f32.mrb[0].mxu0
    %231 = vmatprep.mubr.f32.mxu0 0.0
    %232 = vmatmul.mubr.f32.gmra.mrb[0].mxu0 %v152
    %v233 = vpop.f32.mrb[0].mxu0
    %v234 = vadd.f32 0.0, %v233
    %v235 = vpop.f32.mrb[0].mxu0
    %236 = vmatprep.mubr.f32.mxu0 0.0
    %237 = vmatmul.mubr.f32.gmra.mrb[0].mxu0 %v155
    %v238 = vpop.f32.mrb[0].mxu0
    %v239 = vadd.f32 0.0, %v238
    %v240 = vpop.f32.mrb[0].mxu0
    %241 = vdwg.mxu0
    %v243 = vsel %vm144, %v125, 0
    %v246 = vsel %vm144, %v126, 0
    %v249 = vsel %vm144, %v127, 0
    %v252 = vsel %vm144, %v128, 0
    %254 = vmatprep.subr.mxu0 0.0
    %255 = vmatpush1.msra.mxu0 %v142
    %256 = vmatprep.subr.mxu0 0.0
    %257 = vmatpush1.msra.mxu0 0.0
    %258 = vmatprep.subr.mxu0 0.0
    %259 = vmatpush1.msra.mxu0 0.0
    %260 = vmatprep.subr.mxu0 0.0
    %261 = vmatpush1.msra.mxu0 0.0
    %262 = vmatprep.subr.mxu0 0.0
    %263 = vmatpush1.msra.mxu0 0.0
    %264 = vmatprep.subr.mxu0 0.0
    %265 = vmatpush1.msra.mxu0 0.0
    %266 = vmatprep.subr.mxu0 0.0
    %267 = vmatpush1.msra.mxu0 0.0
    %268 = vmatprep.subr.mxu0 0.0
    %269 = vmatpush1.msra.mxu0 0.0
    %270 = vmatprep.subr.mxu0 0.0
    %271 = vmatpush1.msra.mxu0 0.0
    %272 = vmatprep.subr.mxu0 0.0
    %273 = vmatpush1.msra.mxu0 0.0
    %274 = vmatprep.subr.mxu0 0.0
    %275 = vmatpush1.msra.mxu0 0.0
    %276 = vmatprep.subr.mxu0 0.0
    %277 = vmatpush1.msra.mxu0 0.0
    %278 = vmatprep.subr.mxu0 0.0
    %279 = vmatpush1.msra.mxu0 0.0
    %280 = vmatprep.subr.mxu0 0.0
    %281 = vmatpush1.msra.mxu0 0.0
    %282 = vmatprep.subr.mxu0 0.0
    %283 = vmatpush1.msra.mxu0 0.0
    %284 = vmatprep.subr.mxu0 0.0
    %285 = vmatpush1.msra.mxu0 0.0
    %286 = vmatprep.subr.mxu0 0.0
    %287 = vmatpush1.msra.mxu0 0.0
    %288 = vmatprep.subr.mxu0 0.0
    %289 = vmatpush1.msra.mxu0 0.0
    %290 = vmatprep.subr.mxu0 0.0
    %291 = vmatpush1.msra.mxu0 0.0
    %292 = vmatprep.subr.mxu0 0.0
    %293 = vmatpush1.msra.mxu0 0.0
    %294 = vmatprep.subr.mxu0 0.0
    %295 = vmatpush1.msra.mxu0 0.0
    %296 = vmatprep.subr.mxu0 0.0
    %297 = vmatpush1.msra.mxu0 0.0
    %298 = vmatprep.subr.mxu0 0.0
    %299 = vmatpush1.msra.mxu0 0.0
    %300 = vmatprep.subr.mxu0 0.0
    %301 = vmatpush1.msra.mxu0 0.0
    %302 = vmatprep.subr.mxu0 0.0
    %303 = vmatpush1.msra.mxu0 0.0
    %304 = vmatprep.subr.mxu0 0.0
    %305 = vmatpush1.msra.mxu0 0.0
    %306 = vmatprep.subr.mxu0 0.0
    %307 = vmatpush1.msra.mxu0 0.0
    %308 = vmatprep.subr.mxu0 0.0
    %309 = vmatpush1.msra.mxu0 0.0
    %310 = vmatprep.subr.mxu0 0.0
    %311 = vmatpush1.msra.mxu0 0.0
    %312 = vmatprep.subr.mxu0 0.0
    %313 = vmatpush1.msra.mxu0 0.0
    %314 = vmatprep.subr.mxu0 0.0
    %315 = vmatpush1.msra.mxu0 0.0
    %316 = vmatprep.subr.mxu0 0.0
    %317 = vmatpush1.msra.mxu0 0.0
    %318 = vmatprep.mubr.f32.mxu0 0.0
    %319 = vmatmul.mubr.f32.gmra.mrb[0].mxu0 %v243
    %v320 = vpop.f32.mrb[0].mxu0
    %v321 = vadd.f32 %v224, %v320
    %v322 = vpop.f32.mrb[0].mxu0
    %323 = vmatprep.mubr.f32.mxu0 0.0
    %324 = vmatmul.mubr.f32.gmra.mrb[0].mxu0 %v246
    %v325 = vpop.f32.mrb[0].mxu0
    %v326 = vadd.f32 %v229, %v325
    %v327 = vpop.f32.mrb[0].mxu0
    %328 = vmatprep.mubr.f32.mxu0 0.0
    %329 = vmatmul.mubr.f32.gmra.mrb[0].mxu0 %v249
    %v330 = vpop.f32.mrb[0].mxu0
    %v331 = vadd.f32 %v234, %v330
    %v332 = vpop.f32.mrb[0].mxu0
    %333 = vmatprep.mubr.f32.mxu0 0.0
    %334 = vmatmul.mubr.f32.gmra.mrb[0].mxu0 %v252
    %v335 = vpop.f32.mrb[0].mxu0
    %v336 = vadd.f32 %v239, %v335
    %v337 = vpop.f32.mrb[0].mxu0
    %338 = vdwg.mxu0
    %v339 = vld [vmem:[%s1 + $0x10] sm:$0xff]
    %v341 = vsel %vm144, %v138, 0
    %v344 = vsel %vm144, %v139, 0
    %v347 = vsel %vm144, %v140, 0
    %v350 = vsel %vm144, %v141, 0
    %352 = vmatprep.subr.mxu0 0.0
    %353 = vmatpush1.msra.mxu0 %v339
    %354 = vmatprep.subr.mxu0 0.0
    %355 = vmatpush1.msra.mxu0 0.0
    %356 = vmatprep.subr.mxu0 0.0
    %357 = vmatpush1.msra.mxu0 0.0
    %358 = vmatprep.subr.mxu0 0.0
    %359 = vmatpush1.msra.mxu0 0.0
    %360 = vmatprep.subr.mxu0 0.0
    %361 = vmatpush1.msra.mxu0 0.0
    %362 = vmatprep.subr.mxu0 0.0
    %363 = vmatpush1.msra.mxu0 0.0
    %364 = vmatprep.subr.mxu0 0.0
    %365 = vmatpush1.msra.mxu0 0.0
    %366 = vmatprep.subr.mxu0 0.0
    %367 = vmatpush1.msra.mxu0 0.0
    %368 = vmatprep.subr.mxu0 0.0
    %369 = vmatpush1.msra.mxu0 0.0
    %370 = vmatprep.subr.mxu0 0.0
    %371 = vmatpush1.msra.mxu0 0.0
    %372 = vmatprep.subr.mxu0 0.0
    %373 = vmatpush1.msra.mxu0 0.0
    %374 = vmatprep.subr.mxu0 0.0
    %375 = vmatpush1.msra.mxu0 0.0
    %376 = vmatprep.subr.mxu0 0.0
    %377 = vmatpush1.msra.mxu0 0.0
    %378 = vmatprep.subr.mxu0 0.0
    %379 = vmatpush1.msra.mxu0 0.0
    %380 = vmatprep.subr.mxu0 0.0
    %381 = vmatpush1.msra.mxu0 0.0
    %382 = vmatprep.subr.mxu0 0.0
    %383 = vmatpush1.msra.mxu0 0.0
    %384 = vmatprep.subr.mxu0 0.0
    %385 = vmatpush1.msra.mxu0 0.0
    %386 = vmatprep.subr.mxu0 0.0
    %387 = vmatpush1.msra.mxu0 0.0
    %388 = vmatprep.subr.mxu0 0.0
    %389 = vmatpush1.msra.mxu0 0.0
    %390 = vmatprep.subr.mxu0 0.0
    %391 = vmatpush1.msra.mxu0 0.0
    %392 = vmatprep.subr.mxu0 0.0
    %393 = vmatpush1.msra.mxu0 0.0
    %394 = vmatprep.subr.mxu0 0.0
    %395 = vmatpush1.msra.mxu0 0.0
    %396 = vmatprep.subr.mxu0 0.0
    %397 = vmatpush1.msra.mxu0 0.0
    %398 = vmatprep.subr.mxu0 0.0
    %399 = vmatpush1.msra.mxu0 0.0
    %400 = vmatprep.subr.mxu0 0.0
    %401 = vmatpush1.msra.mxu0 0.0
    %402 = vmatprep.subr.mxu0 0.0
    %403 = vmatpush1.msra.mxu0 0.0
    %404 = vmatprep.subr.mxu0 0.0
    %405 = vmatpush1.msra.mxu0 0.0
    %406 = vmatprep.subr.mxu0 0.0
    %407 = vmatpush1.msra.mxu0 0.0
    %408 = vmatprep.subr.mxu0 0.0
    %409 = vmatpush1.msra.mxu0 0.0
    %410 = vmatprep.subr.mxu0 0.0
    %411 = vmatpush1.msra.mxu0 0.0
    %412 = vmatprep.subr.mxu0 0.0
    %413 = vmatpush1.msra.mxu0 0.0
    %414 = vmatprep.subr.mxu0 0.0
    %415 = vmatpush1.msra.mxu0 0.0
    %416 = vmatprep.mubr.f32.mxu0 0.0
    %417 = vmatmul.mubr.f32.gmra.mrb[0].mxu0 %v341
    %v418 = vpop.f32.mrb[0].mxu0
    %v419 = vadd.f32 0.0, %v418
    %v420 = vpop.f32.mrb[0].mxu0
    %421 = vmatprep.mubr.f32.mxu0 0.0
    %422 = vmatmul.mubr.f32.gmra.mrb[0].mxu0 %v344
    %v423 = vpop.f32.mrb[0].mxu0
    %v424 = vadd.f32 0.0, %v423
    %v425 = vpop.f32.mrb[0].mxu0
    %426 = vmatprep.mubr.f32.mxu0 0.0
    %427 = vmatmul.mubr.f32.gmra.mrb[0].mxu0 %v347
    %v428 = vpop.f32.mrb[0].mxu0
    %v429 = vadd.f32 0.0, %v428
    %v430 = vpop.f32.mrb[0].mxu0
    %431 = vmatprep.mubr.f32.mxu0 0.0
    %432 = vmatmul.mubr.f32.gmra.mrb[0].mxu0 %v350
    %v433 = vpop.f32.mrb[0].mxu0
    %v434 = vadd.f32 0.0, %v433
    %v435 = vpop.f32.mrb[0].mxu0
    %436 = vdwg.mxu0
    %v437 = vadd.f32 %v321, %v419
    %v438 = vadd.f32 %v326, %v424
    %v439 = vadd.f32 %v331, %v429
    %v440 = vadd.f32 %v336, %v434
    %v441 = vld [vmem:[%s4] sm:$0x1]
    %v442 = vlaneseq
    %v443 = vshrl.u32 %v442, 7
    %v444 = vsub.s32 0, %v443
    %v445 = vrot.slane %v441, %v444
    %v446 = vadd.f32 %v437, %v445
    %v447 = vadd.f32 %v438, %v445
    %v448 = vadd.f32 %v439, %v445
    %v449 = vadd.f32 %v440, %v445
    %v450 = vmax.f32 %v446, 0.0
    %v451 = vmax.f32 %v447, 0.0
    %v452 = vmax.f32 %v448, 0.0
    %v453 = vmax.f32 %v449, 0.0
    %v454 = vrot.slane %v450, 7
    %v455 = vrot.slane %v451, 7
    %v456 = vrot.slane %v452, 7
    %v457 = vrot.slane %v453, 7
    %v458 = vsel %vm120, %v456, %v457
    %v459 = vsel %vm120, %v455, %v456
    %v460 = vsel %vm120, %v454, %v455
    %v461 = vsel %vm120, %v457, %v454
    %v462 = vmul.f32 %v461, %v96
    %v463 = vmul.f32 %v460, %v97
    %v464 = vmul.f32 %v459, %v98
    %v465 = vmul.f32 %v458, %v99
    %v466 = vrot.slane %v450, 1
    %v467 = vrot.slane %v451, 1
    %v468 = vrot.slane %v452, 1
    %v469 = vrot.slane %v453, 1
    %v470 = vsel %vm133, %v468, %v469
    %v471 = vsel %vm133, %v467, %v468
    %v472 = vsel %vm133, %v466, %v467
    %v473 = vsel %vm133, %v469, %v466
    %v474 = vmul.f32 %v472, %v108
    %v475 = vmul.f32 %v471, %v109
    %v476 = vmul.f32 %v470, %v110
    %v477 = vmul.f32 %v473, %v111
    %v478 = vld [vmem:[#allocation2] sm:$0xff]
    %v479 = vld [vmem:[#allocation2 + $0x8] sm:$0xff]
    %v480 = vld [vmem:[#allocation2 + $0x10] sm:$0xff]
    %v481 = vld [vmem:[#allocation2 + $0x18] sm:$0xff]
    %v482 = vld [vmem:[#allocation2 + $0x20] sm:$0xff]
    %v483 = vld [vmem:[#allocation2 + $0x28] sm:$0xff]
    %v484 = vld [vmem:[#allocation2 + $0x30] sm:$0xff]
    %v485 = vld [vmem:[#allocation2 + $0x38] sm:$0xff]
    %v486 = vld [vmem:[#allocation2 + $0x40] sm:$0xff]
    %v487 = vld [vmem:[#allocation2 + $0x48] sm:$0xff]
    %v488 = vld [vmem:[#allocation2 + $0x50] sm:$0xff]
    %v489 = vld [vmem:[#allocation2 + $0x58] sm:$0xff]
    %v490 = vld [vmem:[#allocation2 + $0x60] sm:$0xff]
    %v491 = vld [vmem:[#allocation2 + $0x68] sm:$0xff]
    %v492 = vld [vmem:[#allocation2 + $0x70] sm:$0xff]
    %v493 = vld [vmem:[#allocation2 + $0x78] sm:$0xff]
    %v494 = vld [vmem:[#allocation2 + $0x80] sm:$0xff]
    %v495 = vld [vmem:[#allocation2 + $0x88] sm:$0xff]
    %v496 = vld [vmem:[#allocation2 + $0x90] sm:$0xff]
    %v497 = vld [vmem:[#allocation2 + $0x98] sm:$0xff]
    %v498 = vld [vmem:[#allocation2 + $0xa0] sm:$0xff]
    %v499 = vld [vmem:[#allocation2 + $0xa8] sm:$0xff]
    %v500 = vld [vmem:[#allocation2 + $0xb0] sm:$0xff]
    %v501 = vld [vmem:[#allocation2 + $0xb8] sm:$0xff]
    %v502 = vld [vmem:[#allocation2 + $0xc0] sm:$0xff]
    %v503 = vld [vmem:[#allocation2 + $0xc8] sm:$0xff]
    %v504 = vld [vmem:[#allocation2 + $0xd0] sm:$0xff]
    %v505 = vld [vmem:[#allocation2 + $0xd8] sm:$0xff]
    %v506 = vld [vmem:[#allocation2 + $0xe0] sm:$0xff]
    %v507 = vld [vmem:[#allocation2 + $0xe8] sm:$0xff]
    %v508 = vld [vmem:[#allocation2 + $0xf0] sm:$0xff]
    %v509 = vld [vmem:[#allocation2 + $0xf8] sm:$0xff]
    %510 = vmatprep.subr.mxu0 0.0
    %511 = vmatpush1.msra.mxu0 %v494
    %512 = vmatprep.subr.mxu0 0.0
    %513 = vmatpush1.msra.mxu0 %v495
    %514 = vmatprep.subr.mxu0 0.0
    %515 = vmatpush1.msra.mxu0 %v496
    %516 = vmatprep.subr.mxu0 0.0
    %517 = vmatpush1.msra.mxu0 %v497
    %518 = vmatprep.subr.mxu0 0.0
    %519 = vmatpush1.msra.mxu0 %v498
    %520 = vmatprep.subr.mxu0 0.0
    %521 = vmatpush1.msra.mxu0 %v499
    %522 = vmatprep.subr.mxu0 0.0
    %523 = vmatpush1.msra.mxu0 %v500
    %524 = vmatprep.subr.mxu0 0.0
    %525 = vmatpush1.msra.mxu0 %v501
    %526 = vmatprep.subr.mxu0 0.0
    %527 = vmatpush1.msra.mxu0 %v502
    %528 = vmatprep.subr.mxu0 0.0
    %529 = vmatpush1.msra.mxu0 %v503
    %530 = vmatprep.subr.mxu0 0.0
    %531 = vmatpush1.msra.mxu0 %v504
    %532 = vmatprep.subr.mxu0 0.0
    %533 = vmatpush1.msra.mxu0 %v505
    %534 = vmatprep.subr.mxu0 0.0
    %535 = vmatpush1.msra.mxu0 %v506
    %536 = vmatprep.subr.mxu0 0.0
    %537 = vmatpush1.msra.mxu0 %v507
    %538 = vmatprep.subr.mxu0 0.0
    %539 = vmatpush1.msra.mxu0 %v508
    %540 = vmatprep.subr.mxu0 0.0
    %541 = vmatpush1.msra.mxu0 %v509
    %542 = vmatprep.subr.mxu0 0.0
    %543 = vmatpush1.msra.mxu0 0.0
    %544 = vmatprep.subr.mxu0 0.0
    %545 = vmatpush1.msra.mxu0 0.0
    %546 = vmatprep.subr.mxu0 0.0
    %547 = vmatpush1.msra.mxu0 0.0
    %548 = vmatprep.subr.mxu0 0.0
    %549 = vmatpush1.msra.mxu0 0.0
    %550 = vmatprep.subr.mxu0 0.0
    %551 = vmatpush1.msra.mxu0 0.0
    %552 = vmatprep.subr.mxu0 0.0
    %553 = vmatpush1.msra.mxu0 0.0
    %554 = vmatprep.subr.mxu0 0.0
    %555 = vmatpush1.msra.mxu0 0.0
    %556 = vmatprep.subr.mxu0 0.0
    %557 = vmatpush1.msra.mxu0 0.0
    %558 = vmatprep.subr.mxu0 0.0
    %559 = vmatpush1.msra.mxu0 0.0
    %560 = vmatprep.subr.mxu0 0.0
    %561 = vmatpush1.msra.mxu0 0.0
    %562 = vmatprep.subr.mxu0 0.0
    %563 = vmatpush1.msra.mxu0 0.0
    %564 = vmatprep.subr.mxu0 0.0
    %565 = vmatpush1.msra.mxu0 0.0
    %566 = vmatprep.subr.mxu0 0.0
    %567 = vmatpush1.msra.mxu0 0.0
    %568 = vmatprep.subr.mxu0 0.0
    %569 = vmatpush1.msra.mxu0 0.0
    %570 = vmatprep.subr.mxu0 0.0
    %571 = vmatpush1.msra.mxu0 0.0
    %572 = vmatprep.subr.mxu0 0.0
    %573 = vmatpush1.msra.mxu0 0.0
    %574 = vmatprep.mubr.f32.mxu0 0.0
    %575 = vmatmul.mubr.f32.gmra.mrb[0].mxu0 %v450
    %v576 = vpop.f32.mrb[0].mxu0
    %v577 = vadd.f32 0.0, %v576
    %v578 = vpop.f32.mrb[0].mxu0
    %579 = vmatprep.mubr.f32.mxu0 0.0
    %580 = vmatmul.mubr.f32.gmra.mrb[0].mxu0 %v451
    %v581 = vpop.f32.mrb[0].mxu0
    %v582 = vadd.f32 0.0, %v581
    %v583 = vpop.f32.mrb[0].mxu0
    %584 = vmatprep.mubr.f32.mxu0 0.0
    %585 = vmatmul.mubr.f32.gmra.mrb[0].mxu0 %v452
    %v586 = vpop.f32.mrb[0].mxu0
    %v587 = vadd.f32 0.0, %v586
    %v588 = vpop.f32.mrb[0].mxu0
    %589 = vmatprep.mubr.f32.mxu0 0.0
    %590 = vmatmul.mubr.f32.gmra.mrb[0].mxu0 %v453
    %v591 = vpop.f32.mrb[0].mxu0
    %v592 = vadd.f32 0.0, %v591
    %v593 = vpop.f32.mrb[0].mxu0
    %594 = vdwg.mxu0
    %595 = vmatprep.subr.mxu0 0.0
    %596 = vmatpush1.msra.mxu0 %v478
    %597 = vmatprep.subr.mxu0 0.0
    %598 = vmatpush1.msra.mxu0 %v479
    %599 = vmatprep.subr.mxu0 0.0
    %600 = vmatpush1.msra.mxu0 %v480
    %601 = vmatprep.subr.mxu0 0.0
    %602 = vmatpush1.msra.mxu0 %v481
    %603 = vmatprep.subr.mxu0 0.0
    %604 = vmatpush1.msra.mxu0 %v482
    %605 = vmatprep.subr.mxu0 0.0
    %606 = vmatpush1.msra.mxu0 %v483
    %607 = vmatprep.subr.mxu0 0.0
    %608 = vmatpush1.msra.mxu0 %v484
    %609 = vmatprep.subr.mxu0 0.0
    %610 = vmatpush1.msra.mxu0 %v485
    %611 = vmatprep.subr.mxu0 0.0
    %612 = vmatpush1.msra.mxu0 %v486
    %613 = vmatprep.subr.mxu0 0.0
    %614 = vmatpush1.msra.mxu0 %v487
    %615 = vmatprep.subr.mxu0 0.0
    %616 = vmatpush1.msra.mxu0 %v488
    %617 = vmatprep.subr.mxu0 0.0
    %618 = vmatpush1.msra.mxu0 %v489
    %619 = vmatprep.subr.mxu0 0.0
    %620 = vmatpush1.msra.mxu0 %v490
    %621 = vmatprep.subr.mxu0 0.0
    %622 = vmatpush1.msra.mxu0 %v491
    %623 = vmatprep.subr.mxu0 0.0
    %624 = vmatpush1.msra.mxu0 %v492
    %625 = vmatprep.subr.mxu0 0.0
    %626 = vmatpush1.msra.mxu0 %v493
    %627 = vmatprep.subr.mxu0 0.0
    %628 = vmatpush1.msra.mxu0 0.0
    %629 = vmatprep.subr.mxu0 0.0
    %630 = vmatpush1.msra.mxu0 0.0
    %631 = vmatprep.subr.mxu0 0.0
    %632 = vmatpush1.msra.mxu0 0.0
    %633 = vmatprep.subr.mxu0 0.0
    %634 = vmatpush1.msra.mxu0 0.0
    %635 = vmatprep.subr.mxu0 0.0
    %636 = vmatpush1.msra.mxu0 0.0
    %637 = vmatprep.subr.mxu0 0.0
    %638 = vmatpush1.msra.mxu0 0.0
    %639 = vmatprep.subr.mxu0 0.0
    %640 = vmatpush1.msra.mxu0 0.0
    %641 = vmatprep.subr.mxu0 0.0
    %642 = vmatpush1.msra.mxu0 0.0
    %643 = vmatprep.subr.mxu0 0.0
    %644 = vmatpush1.msra.mxu0 0.0
    %645 = vmatprep.subr.mxu0 0.0
    %646 = vmatpush1.msra.mxu0 0.0
    %647 = vmatprep.subr.mxu0 0.0
    %648 = vmatpush1.msra.mxu0 0.0
    %649 = vmatprep.subr.mxu0 0.0
    %650 = vmatpush1.msra.mxu0 0.0
    %651 = vmatprep.subr.mxu0 0.0
    %652 = vmatpush1.msra.mxu0 0.0
    %653 = vmatprep.subr.mxu0 0.0
    %654 = vmatpush1.msra.mxu0 0.0
    %655 = vmatprep.subr.mxu0 0.0
    %656 = vmatpush1.msra.mxu0 0.0
    %657 = vmatprep.subr.mxu0 0.0
    %658 = vmatpush1.msra.mxu0 0.0
    %659 = vmatprep.mubr.f32.mxu0 0.0
    %660 = vmatmul.mubr.f32.gmra.mrb[0].mxu0 %v462
    %v661 = vpop.f32.mrb[0].mxu0
    %v662 = vadd.f32 %v577, %v661
    %v663 = vpop.f32.mrb[0].mxu0
    %664 = vmatprep.mubr.f32.mxu0 0.0
    %665 = vmatmul.mubr.f32.gmra.mrb[0].mxu0 %v463
    %v666 = vpop.f32.mrb[0].mxu0
    %v667 = vadd.f32 %v582, %v666
    %v668 = vpop.f32.mrb[0].mxu0
    %669 = vmatprep.mubr.f32.mxu0 0.0
    %670 = vmatmul.mubr.f32.gmra.mrb[0].mxu0 %v464
    %v671 = vpop.f32.mrb[0].mxu0
    %v672 = vadd.f32 %v587, %v671
    %v673 = vpop.f32.mrb[0].mxu0
    %674 = vmatprep.mubr.f32.mxu0 0.0
    %675 = vmatmul.mubr.f32.gmra.mrb[0].mxu0 %v465
    %v676 = vpop.f32.mrb[0].mxu0
    %v677 = vadd.f32 %v592, %v676
    %v678 = vpop.f32.mrb[0].mxu0
    %679 = vdwg.mxu0
    %v680 = vld [vmem:[#allocation2 + $0x100] sm:$0xff]
    %v681 = vld [vmem:[#allocation2 + $0x108] sm:$0xff]
    %v682 = vld [vmem:[#allocation2 + $0x110] sm:$0xff]
    %v683 = vld [vmem:[#allocation2 + $0x118] sm:$0xff]
    %v684 = vld [vmem:[#allocation2 + $0x120] sm:$0xff]
    %v685 = vld [vmem:[#allocation2 + $0x128] sm:$0xff]
    %v686 = vld [vmem:[#allocation2 + $0x130] sm:$0xff]
    %v687 = vld [vmem:[#allocation2 + $0x138] sm:$0xff]
    %v688 = vld [vmem:[#allocation2 + $0x140] sm:$0xff]
    %v689 = vld [vmem:[#allocation2 + $0x148] sm:$0xff]
    %v690 = vld [vmem:[#allocation2 + $0x150] sm:$0xff]
    %v691 = vld [vmem:[#allocation2 + $0x158] sm:$0xff]
    %v692 = vld [vmem:[#allocation2 + $0x160] sm:$0xff]
    %v693 = vld [vmem:[#allocation2 + $0x168] sm:$0xff]
    %v694 = vld [vmem:[#allocation2 + $0x170] sm:$0xff]
    %v695 = vld [vmem:[#allocation2 + $0x178] sm:$0xff]
    %696 = vmatprep.subr.mxu0 0.0
    %697 = vmatpush1.msra.mxu0 %v680
    %698 = vmatprep.subr.mxu0 0.0
    %699 = vmatpush1.msra.mxu0 %v681
    %700 = vmatprep.subr.mxu0 0.0
    %701 = vmatpush1.msra.mxu0 %v682
    %702 = vmatprep.subr.mxu0 0.0
    %703 = vmatpush1.msra.mxu0 %v683
    %704 = vmatprep.subr.mxu0 0.0
    %705 = vmatpush1.msra.mxu0 %v684
    %706 = vmatprep.subr.mxu0 0.0
    %707 = vmatpush1.msra.mxu0 %v685
    %708 = vmatprep.subr.mxu0 0.0
    %709 = vmatpush1.msra.mxu0 %v686
    %710 = vmatprep.subr.mxu0 0.0
    %711 = vmatpush1.msra.mxu0 %v687
    %712 = vmatprep.subr.mxu0 0.0
    %713 = vmatpush1.msra.mxu0 %v688
    %714 = vmatprep.subr.mxu0 0.0
    %715 = vmatpush1.msra.mxu0 %v689
    %716 = vmatprep.subr.mxu0 0.0
    %717 = vmatpush1.msra.mxu0 %v690
    %718 = vmatprep.subr.mxu0 0.0
    %719 = vmatpush1.msra.mxu0 %v691
    %720 = vmatprep.subr.mxu0 0.0
    %721 = vmatpush1.msra.mxu0 %v692
    %722 = vmatprep.subr.mxu0 0.0
    %723 = vmatpush1.msra.mxu0 %v693
    %724 = vmatprep.subr.mxu0 0.0
    %725 = vmatpush1.msra.mxu0 %v694
    %726 = vmatprep.subr.mxu0 0.0
    %727 = vmatpush1.msra.mxu0 %v695
    %728 = vmatprep.subr.mxu0 0.0
    %729 = vmatpush1.msra.mxu0 0.0
    %730 = vmatprep.subr.mxu0 0.0
    %731 = vmatpush1.msra.mxu0 0.0
    %732 = vmatprep.subr.mxu0 0.0
    %733 = vmatpush1.msra.mxu0 0.0
    %734 = vmatprep.subr.mxu0 0.0
    %735 = vmatpush1.msra.mxu0 0.0
    %736 = vmatprep.subr.mxu0 0.0
    %737 = vmatpush1.msra.mxu0 0.0
    %738 = vmatprep.subr.mxu0 0.0
    %739 = vmatpush1.msra.mxu0 0.0
    %740 = vmatprep.subr.mxu0 0.0
    %741 = vmatpush1.msra.mxu0 0.0
    %742 = vmatprep.subr.mxu0 0.0
    %743 = vmatpush1.msra.mxu0 0.0
    %744 = vmatprep.subr.mxu0 0.0
    %745 = vmatpush1.msra.mxu0 0.0
    %746 = vmatprep.subr.mxu0 0.0
    %747 = vmatpush1.msra.mxu0 0.0
    %748 = vmatprep.subr.mxu0 0.0
    %749 = vmatpush1.msra.mxu0 0.0
    %750 = vmatprep.subr.mxu0 0.0
    %751 = vmatpush1.msra.mxu0 0.0
    %752 = vmatprep.subr.mxu0 0.0
    %753 = vmatpush1.msra.mxu0 0.0
    %754 = vmatprep.subr.mxu0 0.0
    %755 = vmatpush1.msra.mxu0 0.0
    %756 = vmatprep.subr.mxu0 0.0
    %757 = vmatpush1.msra.mxu0 0.0
    %758 = vmatprep.subr.mxu0 0.0
    %759 = vmatpush1.msra.mxu0 0.0
    %760 = vmatprep.mubr.f32.mxu0 0.0
    %761 = vmatmul.mubr.f32.gmra.mrb[0].mxu0 %v474
    %v762 = vpop.f32.mrb[0].mxu0
    %v763 = vadd.f32 0.0, %v762
    %v764 = vpop.f32.mrb[0].mxu0
    %765 = vmatprep.mubr.f32.mxu0 0.0
    %766 = vmatmul.mubr.f32.gmra.mrb[0].mxu0 %v475
    %v767 = vpop.f32.mrb[0].mxu0
    %v768 = vadd.f32 0.0, %v767
    %v769 = vpop.f32.mrb[0].mxu0
    %770 = vmatprep.mubr.f32.mxu0 0.0
    %771 = vmatmul.mubr.f32.gmra.mrb[0].mxu0 %v476
    %v772 = vpop.f32.mrb[0].mxu0
    %v773 = vadd.f32 0.0, %v772
    %v774 = vpop.f32.mrb[0].mxu0
    %775 = vmatprep.mubr.f32.mxu0 0.0
    %776 = vmatmul.mubr.f32.gmra.mrb[0].mxu0 %v477
    %v777 = vpop.f32.mrb[0].mxu0
    %v778 = vadd.f32 0.0, %v777
    %v779 = vpop.f32.mrb[0].mxu0
    %780 = vdwg.mxu0
    %v781 = vadd.f32 %v662, %v763
    %v782 = vadd.f32 %v667, %v768
    %v783 = vadd.f32 %v672, %v773
    %v784 = vadd.f32 %v677, %v778
    %v785 = vld [vmem:[%s3] sm:$0xff]
    %786 = vmatprep.subr.mxu0 0.0
    %787 = vmatpush1.msra.mxu0 %v785
    %788 = vmatprep.subr.mxu0 0.0
    %789 = vmatpush1.msra.mxu0 0.0
    %790 = vmatprep.subr.mxu0 0.0
    %791 = vmatpush1.msra.mxu0 0.0
    %792 = vmatprep.subr.mxu0 0.0
    %793 = vmatpush1.msra.mxu0 0.0
    %794 = vmatprep.subr.mxu0 0.0
    %795 = vmatpush1.msra.mxu0 0.0
    %796 = vmatprep.subr.mxu0 0.0
    %797 = vmatpush1.msra.mxu0 0.0
    %798 = vmatprep.subr.mxu0 0.0
    %799 = vmatpush1.msra.mxu0 0.0
    %800 = vmatprep.subr.mxu0 0.0
    %801 = vmatpush1.msra.mxu0 0.0
    %802 = vmatprep.subr.mxu0 0.0
    %803 = vmatpush1.msra.mxu0 0.0
    %804 = vmatprep.subr.mxu0 0.0
    %805 = vmatpush1.msra.mxu0 0.0
    %806 = vmatprep.subr.mxu0 0.0
    %807 = vmatpush1.msra.mxu0 0.0
    %808 = vmatprep.subr.mxu0 0.0
    %809 = vmatpush1.msra.mxu0 0.0
    %810 = vmatprep.subr.mxu0 0.0
    %811 = vmatpush1.msra.mxu0 0.0
    %812 = vmatprep.subr.mxu0 0.0
    %813 = vmatpush1.msra.mxu0 0.0
    %814 = vmatprep.subr.mxu0 0.0
    %815 = vmatpush1.msra.mxu0 0.0
    %816 = vmatprep.subr.mxu0 0.0
    %817 = vmatpush1.msra.mxu0 0.0
    %818 = vmatprep.subr.mxu0 0.0
    %819 = vmatpush1.msra.mxu0 0.0
    %820 = vmatprep.subr.mxu0 0.0
    %821 = vmatpush1.msra.mxu0 0.0
    %822 = vmatprep.subr.mxu0 0.0
    %823 = vmatpush1.msra.mxu0 0.0
    %824 = vmatprep.subr.mxu0 0.0
    %825 = vmatpush1.msra.mxu0 0.0
    %826 = vmatprep.subr.mxu0 0.0
    %827 = vmatpush1.msra.mxu0 0.0
    %828 = vmatprep.subr.mxu0 0.0
    %829 = vmatpush1.msra.mxu0 0.0
    %830 = vmatprep.subr.mxu0 0.0
    %831 = vmatpush1.msra.mxu0 0.0
    %832 = vmatprep.subr.mxu0 0.0
    %833 = vmatpush1.msra.mxu0 0.0
    %834 = vmatprep.subr.mxu0 0.0
    %835 = vmatpush1.msra.mxu0 0.0
    %836 = vmatprep.subr.mxu0 0.0
    %837 = vmatpush1.msra.mxu0 0.0
    %838 = vmatprep.subr.mxu0 0.0
    %839 = vmatpush1.msra.mxu0 0.0
    %840 = vmatprep.subr.mxu0 0.0
    %841 = vmatpush1.msra.mxu0 0.0
    %842 = vmatprep.subr.mxu0 0.0
    %843 = vmatpush1.msra.mxu0 0.0
    %844 = vmatprep.subr.mxu0 0.0
    %845 = vmatpush1.msra.mxu0 0.0
    %846 = vmatprep.subr.mxu0 0.0
    %847 = vmatpush1.msra.mxu0 0.0
    %848 = vmatprep.subr.mxu0 0.0
    %849 = vmatpush1.msra.mxu0 0.0
    %850 = vmatprep.mubr.f32.mxu0 0.0
    %851 = vmatmul.mubr.f32.gmra.mrb[0].mxu0 %v146
    %v852 = vpop.f32.mrb[0].mxu0
    %v853 = vadd.f32 0.0, %v852
    %v854 = vpop.f32.mrb[0].mxu0
    %855 = vmatprep.mubr.f32.mxu0 0.0
    %856 = vmatmul.mubr.f32.gmra.mrb[0].mxu0 %v149
    %v857 = vpop.f32.mrb[0].mxu0
    %v858 = vadd.f32 0.0, %v857
    %v859 = vpop.f32.mrb[0].mxu0
    %860 = vmatprep.mubr.f32.mxu0 0.0
    %861 = vmatmul.mubr.f32.gmra.mrb[0].mxu0 %v152
    %v862 = vpop.f32.mrb[0].mxu0
    %v863 = vadd.f32 0.0, %v862
    %v864 = vpop.f32.mrb[0].mxu0
    %865 = vmatprep.mubr.f32.mxu0 0.0
    %866 = vmatmul.mubr.f32.gmra.mrb[0].mxu0 %v155
    %v867 = vpop.f32.mrb[0].mxu0
    %v868 = vadd.f32 0.0, %v867
    %v869 = vpop.f32.mrb[0].mxu0
    %870 = vdwg.mxu0
    %v871 = vadd.f32 %v781, %v853
    %v872 = vadd.f32 %v782, %v858
    %v873 = vadd.f32 %v783, %v863
    %v874 = vadd.f32 %v784, %v868
    %v875 = vld [vmem:[%s4 + $0x1] sm:$0x1]
    %v876 = vlaneseq
    %v877 = vshrl.u32 %v876, 7
    %v878 = vsub.s32 0, %v877
    %v879 = vrot.slane %v875, %v878
    %v880 = vadd.f32 %v871, %v879
    %v881 = vadd.f32 %v872, %v879
    %v882 = vadd.f32 %v873, %v879
    %v883 = vadd.f32 %v874, %v879
    %884 = vrot.lane.b32.xlu0 %v880, 64
    %v885 = vpop.permute.xlu0 %884
    %886 = vrot.lane.b32.xlu0 %v881, 64
    %v887 = vpop.permute.xlu0 %886
    %888 = vrot.lane.b32.xlu0 %v882, 64
    %v889 = vpop.permute.xlu0 %888
    %890 = vrot.lane.b32.xlu0 %v883, 64
    %v891 = vpop.permute.xlu0 %890
    %v892 = vld [vmem:[%s4 + $0x2] sm:$0x1]
    %v893 = vlaneseq
    %v894 = vshrl.u32 %v893, 7
    %v895 = vsub.s32 0, %v894
    %v896 = vrot.slane %v892, %v895
    %v897 = vmul.f32 %v885, %v896
    %v898 = vmul.f32 %v887, %v896
    %v899 = vmul.f32 %v889, %v896
    %v900 = vmul.f32 %v891, %v896
    %v901 = vld [vmem:[%s4 + $0x3] sm:$0x1]
    %v902 = vlaneseq
    %v903 = vshrl.u32 %v902, 7
    %v904 = vsub.s32 0, %v903
    %v905 = vrot.slane %v901, %v904
    %v906 = vadd.f32 %v897, %v905
    %v907 = vadd.f32 %v898, %v905
    %v908 = vadd.f32 %v899, %v905
    %v909 = vadd.f32 %v900, %v905
    %v910 = vmax.f32 %v906, 0.0
    %v911 = vmax.f32 %v907, 0.0
    %v912 = vmax.f32 %v908, 0.0
    %v913 = vmax.f32 %v909, 0.0
    %v914 = vadd.f32 %v880, %v910
    %v915 = vadd.f32 %v881, %v911
    %v916 = vadd.f32 %v882, %v912
    %v917 = vadd.f32 %v883, %v913
    %918 = vst [vmem:[#allocation5] sm:$0xff] %v914
    %919 = vst [vmem:[#allocation5 + $0x8] sm:$0xff] %v915
    %920 = vst [vmem:[#allocation5 + $0x10] sm:$0xff] %v916
    %921 = vst [vmem:[#allocation5 + $0x18] sm:$0xff] %v917
    // Predicated region
    $region26: #{tpu_custom_call.1} parent=1 // pred_check
      _
    $region27: #{tpu_custom_call.1} parent=1 // pred_check_branch
      %923 = sbr.rel (0) target = $region29
    $region28: #{tpu_custom_call.1} parent=1 // pred_region
      %s925 = ssub.s32 512, 512
      %926 = vsyncadd [#allocation4], %s925
      %s927 = sshll.u32 [#allocation5], 4
      %s928 = int_to_ptr.vmem [resolvable:$true] %s927
      %933 = dma.vmem_to_hbm [thread:$0]  %s928, 512, %s5, [#allocation4], 128, 128, 8
    $region29: #{tpu_custom_call.1} parent=1 // pred_fallthru
      _
    // Predicated region
    $region30: #{tpu_custom_call.1} parent=1 // pred_check
      _
    $region31: #{tpu_custom_call.1} parent=1 // pred_check_branch
      %935 = sbr.rel (0) target = $region33
    $region32: #{tpu_custom_call.1} parent=1 // pred_region
      %936 = dma.done [#allocation4], 512
    $region33: #{tpu_custom_call.1} parent=1 // pred_fallthru
      _
    %937 = vsyncpa [#allocation3], 1
    %938 = vsyncpa [#allocation4], 1

</llo_original>
